<compile_context>
chip_gen: v5e
topology: v5e:2x2
jax: 0.10.0
libtpu: 0.0.40
codegen_flags: <defaults>
</compile_context>

<pallas_src>
import functools

import jax
import jax.numpy as jnp
from jax.experimental import pallas as pl
from jax.experimental.pallas import tpu as pltpu


def attention_unit_kernel(x_ref, s_ref, wx_ref, ws_ref, b_ref, ww_ref,
                          out_ref, *, block_b, T):
    # x_ref:  (block_b*T, xDim)   flattened rows -> one big MXU matmul
    # s_ref:  (block_b, sDim)
    # wx_ref: (xDim, attDim), ws_ref: (sDim, attDim)
    # b_ref:  (1, attDim)  == bx + bs (folded)
    # ww_ref: (1, attDim)  == wEmbed weight as a row (bw dropped: shift-invariant)
    # out_ref:(block_b, T) lane-dense alpha

    x_proj = jnp.dot(x_ref[...], wx_ref[...],
                     preferred_element_type=jnp.float32)      # (block_b*T, attDim)
    s_proj = jnp.dot(s_ref[...], ws_ref[...],
                     preferred_element_type=jnp.float32)      # (block_b, attDim)

    # Broadcast sProj over T, add folded bias once, tanh.
    h = x_proj.reshape(block_b, T, -1) + s_proj[:, None, :] + b_ref[...]
    sum_tanh = jnp.tanh(h)                                    # (block_b, T, attDim)

    # wEmbed: VPU multiply by the ww row + lane (XLU) reduce instead of an
    # N=1 MXU matmul.  bw omitted (no effect on softmax).
    v = jnp.sum(sum_tanh * ww_ref[...], axis=-1)              # (block_b, T)

    # Lane-major softmax over T (last axis).
    m = jnp.max(v, axis=-1, keepdims=True)
    e = jnp.exp(v - m)
    denom = jnp.sum(e, axis=-1, keepdims=True)
    out_ref[...] = e * pl.reciprocal(denom, approx=True)      # (block_b, T)


def attention_unit(x, s_prev, params, *, block_b=None):
    """x: (B, T, xDim) f32; s_prev: (1, B, sDim) f32. Returns alpha (B, T)."""
    B, T, xDim = x.shape
    sDim = s_prev.shape[-1]
    attDim = params["wx"].shape[1]

    if block_b is None:
        block_b = B                       # one grid step for small B
    assert B % block_b == 0
    n_blocks = B // block_b

    # Flatten batch*time in the wrapper so the kernel's x block is already a
    # dense (Bblk*T, xDim) matmul operand.
    x_flat = x.reshape(B * T, xDim)
    s2 = s_prev.reshape(B, sDim)          # squeeze(0)

    wx = params["wx"]                                        # (xDim, attDim)
    ws = params["ws"]                                        # (sDim, attDim)
    b = (params["bx"] + params["bs"]).reshape(1, attDim)     # folded bias
    ww = params["ww"].reshape(1, attDim)                     # row; bw dropped

    kernel = functools.partial(attention_unit_kernel, block_b=block_b, T=T)

    out = pl.pallas_call(
        kernel,
        out_shape=jax.ShapeDtypeStruct((B, T), jnp.float32),
        grid_spec=pltpu.PrefetchScalarGridSpec(
            num_scalar_prefetch=0,
            grid=(n_blocks,),
            in_specs=[
                pl.BlockSpec((block_b * T, xDim), lambda i: (i, 0)),  # x rows
                pl.BlockSpec((block_b, sDim), lambda i: (i, 0)),      # sPrev
                pl.BlockSpec((xDim, attDim), lambda i: (0, 0)),       # Wx^T
                pl.BlockSpec((sDim, attDim), lambda i: (0, 0)),       # Ws^T
                pl.BlockSpec((1, attDim), lambda i: (0, 0)),          # bx+bs
                pl.BlockSpec((1, attDim), lambda i: (0, 0)),          # Ww row
            ],
            out_specs=pl.BlockSpec((block_b, T), lambda i: (i, 0)),   # lane-dense
        ),
        compiler_params=pltpu.CompilerParams(
            dimension_semantics=("parallel",)),
    )(x_flat, s2, wx, ws, b, ww)

    return out


def init_params(key, sDim, xDim, attDim):
    # Mirrors AttentionUnit.init_weights(): normal(std=0.01) weights, zero bias.
    k1, k2, k3 = jax.random.split(key, 3)
    return {
        "wx": 0.01 * jax.random.normal(k1, (xDim, attDim), jnp.float32),
        "bx": jnp.zeros((attDim,), jnp.float32),
        "ws": 0.01 * jax.random.normal(k2, (sDim, attDim), jnp.float32),
        "bs": jnp.zeros((attDim,), jnp.float32),
        "ww": 0.01 * jax.random.normal(k3, (attDim, 1), jnp.float32),
        "bw": jnp.zeros((1,), jnp.float32),
    }


def reference(x, s_prev, params):
    B, T, xDim = x.shape
    s = s_prev.reshape(B, -1)
    x_proj = x.reshape(-1, xDim) @ params["wx"] + params["bx"]
    x_proj = x_proj.reshape(B, T, -1)
    s_proj = (s @ params["ws"] + params["bs"])[:, None, :]
    sum_tanh = jnp.tanh(s_proj + x_proj)
    v = (sum_tanh.reshape(-1, sum_tanh.shape[-1]) @ params["ww"]
         + params["bw"]).reshape(B, T)
    return jax.nn.softmax(v, axis=1)


if __name__ == "__main__":
    B, T = 2, 8
    sDim, xDim, attDim = 32, 32, 32

    key = jax.random.PRNGKey(0)
    kx, ks, kp = jax.random.split(key, 3)
    x = jax.random.normal(kx, (B, T, xDim), jnp.float32)
    s_prev = jax.random.normal(ks, (1, B, sDim), jnp.float32)
    params = init_params(kp, sDim, xDim, attDim)

    alpha = attention_unit(x, s_prev, params)
    alpha = jax.block_until_ready(alpha)

    ref = reference(x, s_prev, params)
    assert alpha.shape == (B, T)
    err = jnp.max(jnp.abs(alpha - ref))
    # Tolerance 1e-4 accommodates the approx (EUP) reciprocal in the softmax.
    assert err < 1e-4, f"max err {err}"
    print("KERNEL_OK")
</pallas_src>

<mosaic_0001>
module attributes {stable_mosaic.version = 11 : i64} {
  func.func @attention_unit_kernel(%arg0: i32, %arg1: memref<16x32xf32, #tpu.memory_space<vmem>>, %arg2: memref<2x32xf32, #tpu.memory_space<vmem>>, %arg3: memref<32x32xf32, #tpu.memory_space<vmem>>, %arg4: memref<32x32xf32, #tpu.memory_space<vmem>>, %arg5: memref<1x32xf32, #tpu.memory_space<vmem>>, %arg6: memref<1x32xf32, #tpu.memory_space<vmem>>, %arg7: memref<2x8xf32, #tpu.memory_space<vmem>>) attributes {dimension_semantics = [#tpu.dimension_semantics<parallel>], iteration_bounds = array<i64: 1>, scalar_prefetch = 0 : i64, scratch_operands = 0 : i64, tpu.core_type = #tpu.core_type<tc>, window_params = [{transform_indices = @transform_0, window_bounds = array<i64: 16, 32>}, {transform_indices = @transform_1, window_bounds = array<i64: 2, 32>}, {pipeline_mode = #tpu.pipeline_mode<synchronous>, transform_indices = @transform_2, window_bounds = array<i64: 32, 32>}, {pipeline_mode = #tpu.pipeline_mode<synchronous>, transform_indices = @transform_3, window_bounds = array<i64: 32, 32>}, {pipeline_mode = #tpu.pipeline_mode<synchronous>, transform_indices = @transform_4, window_bounds = array<i64: 1, 32>}, {pipeline_mode = #tpu.pipeline_mode<synchronous>, transform_indices = @transform_5, window_bounds = array<i64: 1, 32>}, {transform_indices = @transform_6, window_bounds = array<i64: 2, 8>}]} {
    %c0 = arith.constant 0 : index
    %c0_0 = arith.constant 0 : index
    %0 = vector.load %arg1[%c0, %c0_0] : memref<16x32xf32, #tpu.memory_space<vmem>>, vector<16x32xf32>
    %c0_1 = arith.constant 0 : index
    %c0_2 = arith.constant 0 : index
    %1 = vector.load %arg3[%c0_1, %c0_2] : memref<32x32xf32, #tpu.memory_space<vmem>>, vector<32x32xf32>
    %cst = arith.constant dense<0.000000e+00> : vector<16x32xf32>
    %2 = tpu.matmul %0, %1, %cst {dimension_numbers = #tpu.dot_dimension_numbers<[1], [0], [0], [1], [0, 0, 1, 1], [], []>} : vector<16x32xf32>, vector<32x32xf32>, vector<16x32xf32> -> vector<16x32xf32>
    %c0_3 = arith.constant 0 : index
    %c0_4 = arith.constant 0 : index
    %3 = vector.load %arg2[%c0_3, %c0_4] : memref<2x32xf32, #tpu.memory_space<vmem>>, vector<2x32xf32>
    %c0_5 = arith.constant 0 : index
    %c0_6 = arith.constant 0 : index
    %4 = vector.load %arg4[%c0_5, %c0_6] : memref<32x32xf32, #tpu.memory_space<vmem>>, vector<32x32xf32>
    %cst_7 = arith.constant dense<0.000000e+00> : vector<2x32xf32>
    %5 = tpu.matmul %3, %4, %cst_7 {dimension_numbers = #tpu.dot_dimension_numbers<[1], [0], [0], [1], [0, 0, 1, 1], [], []>} : vector<2x32xf32>, vector<32x32xf32>, vector<2x32xf32> -> vector<2x32xf32>
    %6 = vector.shape_cast %2 : vector<16x32xf32> to vector<2x8x32xf32>
    %7 = vector.shape_cast %5 : vector<2x32xf32> to vector<2x1x32xf32>
    %8 = vector.broadcast %7 : vector<2x1x32xf32> to vector<2x8x32xf32>
    %9 = arith.addf %6, %8 : vector<2x8x32xf32>
    %c0_8 = arith.constant 0 : index
    %c0_9 = arith.constant 0 : index
    %10 = vector.load %arg5[%c0_8, %c0_9] : memref<1x32xf32, #tpu.memory_space<vmem>>, vector<1x32xf32>
    %11 = vector.shape_cast %10 : vector<1x32xf32> to vector<1x1x32xf32>
    %12 = vector.broadcast %11 : vector<1x1x32xf32> to vector<2x8x32xf32>
    %13 = arith.addf %9, %12 : vector<2x8x32xf32>
    %14 = math.tanh %13 : vector<2x8x32xf32>
    %c0_10 = arith.constant 0 : index
    %c0_11 = arith.constant 0 : index
    %15 = vector.load %arg6[%c0_10, %c0_11] : memref<1x32xf32, #tpu.memory_space<vmem>>, vector<1x32xf32>
    %16 = vector.shape_cast %15 : vector<1x32xf32> to vector<1x1x32xf32>
    %17 = vector.broadcast %16 : vector<1x1x32xf32> to vector<2x8x32xf32>
    %18 = arith.mulf %14, %17 : vector<2x8x32xf32>
    %cst_12 = arith.constant dense<0.000000e+00> : vector<2x8xf32>
    %19 = vector.multi_reduction <add>, %18, %cst_12 [2] : vector<2x8x32xf32> to vector<2x8xf32>
    %cst_13 = arith.constant dense<0xFF800000> : vector<2xf32>
    %20 = vector.multi_reduction <maximumf>, %19, %cst_13 [1] : vector<2x8xf32> to vector<2xf32>
    %21 = vector.shape_cast %20 : vector<2xf32> to vector<2x1xf32>
    %22 = vector.broadcast %21 : vector<2x1xf32> to vector<2x8xf32>
    %23 = arith.subf %19, %22 : vector<2x8xf32>
    %24 = math.exp %23 : vector<2x8xf32>
    %cst_14 = arith.constant dense<0.000000e+00> : vector<2xf32>
    %25 = vector.multi_reduction <add>, %24, %cst_14 [1] : vector<2x8xf32> to vector<2xf32>
    %26 = vector.shape_cast %25 : vector<2xf32> to vector<2x1xf32>
    %27 = tpu.reciprocal %26 {approx = true} : vector<2x1xf32> -> vector<2x1xf32>
    %28 = vector.broadcast %27 : vector<2x1xf32> to vector<2x8xf32>
    %29 = arith.mulf %24, %28 : vector<2x8xf32>
    %c0_15 = arith.constant 0 : index
    %c0_16 = arith.constant 0 : index
    %30 = vector.load %arg7[%c0_15, %c0_16] : memref<2x8xf32, #tpu.memory_space<vmem>>, vector<2x8xf32>
    tpu.vector_store %arg7[%c0_15, %c0_16], %29 {strides = array<i32>} : memref<2x8xf32, #tpu.memory_space<vmem>>, vector<2x8xf32>,
    return
  }
  func.func @transform_0(%arg0: i32) -> (i32, i32) {
    %c0_i32 = arith.constant 0 : i32
    %c0_i32_0 = arith.constant 0 : i32
    return %arg0, %c0_i32 : i32, i32
  }
  func.func @transform_1(%arg0: i32) -> (i32, i32) {
    %c0_i32 = arith.constant 0 : i32
    %c0_i32_0 = arith.constant 0 : i32
    return %arg0, %c0_i32 : i32, i32
  }
  func.func @transform_2(%arg0: i32) -> (i32, i32) {
    %c0_i32 = arith.constant 0 : i32
    %c0_i32_0 = arith.constant 0 : i32
    %c0_i32_1 = arith.constant 0 : i32
    return %c0_i32, %c0_i32_0 : i32, i32
  }
  func.func @transform_3(%arg0: i32) -> (i32, i32) {
    %c0_i32 = arith.constant 0 : i32
    %c0_i32_0 = arith.constant 0 : i32
    %c0_i32_1 = arith.constant 0 : i32
    return %c0_i32, %c0_i32_0 : i32, i32
  }
  func.func @transform_4(%arg0: i32) -> (i32, i32) {
    %c0_i32 = arith.constant 0 : i32
    %c0_i32_0 = arith.constant 0 : i32
    %c0_i32_1 = arith.constant 0 : i32
    return %c0_i32, %c0_i32_0 : i32, i32
  }
  func.func @transform_5(%arg0: i32) -> (i32, i32) {
    %c0_i32 = arith.constant 0 : i32
    %c0_i32_0 = arith.constant 0 : i32
    %c0_i32_1 = arith.constant 0 : i32
    return %c0_i32, %c0_i32_0 : i32, i32
  }
  func.func @transform_6(%arg0: i32) -> (i32, i32) {
    %c0_i32 = arith.constant 0 : i32
    %c0_i32_0 = arith.constant 0 : i32
    return %arg0, %c0_i32 : i32, i32
  }
}

</mosaic_0001>

<llo_original>
// kernel: tpu_custom_call.1
$region0: #{tpu_custom_call.1}
  #allocation0 [shape = 'u32[]', space=smem, size = 0x4, offset = 0x4, fixed_abs, tag = 'smem constant byte address 0x4 - core index']
  #allocation1 [shape = 'u32[72,128]{1,0:T(1,128)}', space=vmem, size = 0x9000, scoped, tag = 'internal scratch']
  %s0 = inlined_call_operand.hbm [shape: f32[16,32], index: 0, kind: input, shape index: {}]
  %s1 = inlined_call_operand.hbm [shape: f32[2,32], index: 1, kind: input, shape index: {}]
  %s2 = inlined_call_operand.hbm [shape: f32[32,32], index: 2, kind: input, shape index: {}]
  %s3 = inlined_call_operand.hbm [shape: f32[32,32], index: 3, kind: input, shape index: {}]
  %s4 = inlined_call_operand.vmem [shape: f32[1,32], index: 4, kind: input, shape index: {}]
  %s5 = inlined_call_operand.vmem [shape: f32[1,32], index: 5, kind: input, shape index: {}]
  %s6 = inlined_call_operand.hbm [shape: f32[2,8], index: 6, kind: output, shape index: {}]
  %s7 = sld [smem:[#allocation0]]
  $region50: #{tpu_custom_call.1} parent=0
    _
  %s9 = ssub.s32 1, %s7
  %s10 = scalar_select 0, %s9, %s7
  $region1: #{tpu_custom_call.1} parent=0
    #allocation2 [shape = 'u8[8192]{0}', space=vmem, size = 0x2000, scoped, tag = 'input window, operand 0, single buffered']
    #allocation3 [shape = 's32[1]{0}', space=sflag, size = 0x4, scoped, tag = 'scoped memory for tpu_custom_call.1']
    #allocation4 [shape = 's32[1]{0}', space=sflag, size = 0x4, scoped, tag = 'scoped memory for tpu_custom_call.1']
    #allocation5 [shape = 'u8[1024]{0}', space=vmem, size = 0x400, scoped, tag = 'input window, operand 1, single buffered']
    #allocation6 [shape = 's32[1]{0}', space=sflag, size = 0x4, scoped, tag = 'scoped memory for tpu_custom_call.1']
    #allocation7 [shape = 'u8[16384]{0}', space=vmem, size = 0x4000, scoped, tag = 'input window, operand 2, single buffered']
    #allocation8 [shape = 'u8[16384]{0}', space=vmem, size = 0x4000, scoped, tag = 'input window, operand 3, single buffered']
    #allocation9 [shape = 's32[1]{0}', space=sflag, size = 0x4, scoped, tag = 'scoped memory for tpu_custom_call.1']
    #allocation10 [shape = 'u8[1024]{0}', space=vmem, size = 0x400, scoped, tag = 'output window, operand 0, single buffered']
    %11 = vsyncpa [#allocation3], 0
    %12 = vsyncpa [#allocation6], 0
    %13 = vsyncpa [#allocation9], 0
    %14 = vsyncpa [#allocation4], 0
    // Predicated region
    $region2: #{tpu_custom_call.1} parent=1 // pred_check
      _
    $region3: #{tpu_custom_call.1} parent=1 // pred_check_branch
      %16 = sbr.rel (0) target = $region5
    $region4: #{tpu_custom_call.1} parent=1 // pred_region
      %18 = vsyncadd [#allocation3], 0
      %s19 = sshll.u32 %s0, 4
      %s20 = int_to_ptr.hbm [resolvable:$true] %s19
      %s21 = sshll.u32 [#allocation2], 4
      %s22 = int_to_ptr.vmem [resolvable:$true] %s21
      %27 = dma.hbm_to_vmem [thread:$0]  %s20, 256, %s22, [#allocation3], 128, 128, 8
    $region5: #{tpu_custom_call.1} parent=1 // pred_fallthru
      _
    // Predicated region
    $region6: #{tpu_custom_call.1} parent=1 // pred_check
      _
    $region7: #{tpu_custom_call.1} parent=1 // pred_check_branch
      %29 = sbr.rel (0) target = $region9
    $region8: #{tpu_custom_call.1} parent=1 // pred_region
      %31 = vsyncadd [#allocation6], 0
      %s33 = sshll.u32 %s1, 4
      %s34 = int_to_ptr.hbm [resolvable:$true] %s33
      %s35 = sshll.u32 [#allocation5], 4
      %s36 = int_to_ptr.vmem [resolvable:$true] %s35
      %38 = dma.hbm_to_vmem [thread:$0]  %s34, 32, %s36, [#allocation6]
    $region9: #{tpu_custom_call.1} parent=1 // pred_fallthru
      _
    // Predicated region
    $region10: #{tpu_custom_call.1} parent=1 // pred_check
      _
    $region11: #{tpu_custom_call.1} parent=1 // pred_check_branch
      %40 = sbr.rel (0) target = $region13
    $region12: #{tpu_custom_call.1} parent=1 // pred_region
      %42 = vsyncadd [#allocation6], 0
      %s43 = sshll.u32 %s2, 4
      %s44 = int_to_ptr.hbm [resolvable:$true] %s43
      %s45 = sshll.u32 [#allocation7], 4
      %s46 = int_to_ptr.vmem [resolvable:$true] %s45
      %51 = dma.hbm_to_vmem [thread:$0]  %s44, 512, %s46, [#allocation6], 128, 128, 8
    $region13: #{tpu_custom_call.1} parent=1 // pred_fallthru
      _
    // Predicated region
    $region14: #{tpu_custom_call.1} parent=1 // pred_check
      _
    $region15: #{tpu_custom_call.1} parent=1 // pred_check_branch
      %53 = sbr.rel (0) target = $region17
    $region16: #{tpu_custom_call.1} parent=1 // pred_region
      %55 = vsyncadd [#allocation9], 0
      %s56 = sshll.u32 %s3, 4
      %s57 = int_to_ptr.hbm [resolvable:$true] %s56
      %s58 = sshll.u32 [#allocation8], 4
      %s59 = int_to_ptr.vmem [resolvable:$true] %s58
      %64 = dma.hbm_to_vmem [thread:$0]  %s57, 512, %s59, [#allocation9], 128, 128, 8
    $region17: #{tpu_custom_call.1} parent=1 // pred_fallthru
      _
    // Predicated region
    $region18: #{tpu_custom_call.1} parent=1 // pred_check
      _
    $region19: #{tpu_custom_call.1} parent=1 // pred_check_branch
      %66 = sbr.rel (0) target = $region21
    $region20: #{tpu_custom_call.1} parent=1 // pred_region
      _
    $region21: #{tpu_custom_call.1} parent=1 // pred_fallthru
      _
    // Predicated region
    $region22: #{tpu_custom_call.1} parent=1 // pred_check
      _
    $region23: #{tpu_custom_call.1} parent=1 // pred_check_branch
      %68 = sbr.rel (0) target = $region25
    $region24: #{tpu_custom_call.1} parent=1 // pred_region
      _
    $region25: #{tpu_custom_call.1} parent=1 // pred_fallthru
      _
    // Predicated region
    $region26: #{tpu_custom_call.1} parent=1 // pred_check
      _
    $region27: #{tpu_custom_call.1} parent=1 // pred_check_branch
      %70 = sbr.rel (0) target = $region29
    $region28: #{tpu_custom_call.1} parent=1 // pred_region
      %72 = dma.done [#allocation3], 256
    $region29: #{tpu_custom_call.1} parent=1 // pred_fallthru
      _
    // Predicated region
    $region30: #{tpu_custom_call.1} parent=1 // pred_check
      _
    $region31: #{tpu_custom_call.1} parent=1 // pred_check_branch
      %74 = sbr.rel (0) target = $region33
    $region32: #{tpu_custom_call.1} parent=1 // pred_region
      %76 = dma.done [#allocation6], 32
    $region33: #{tpu_custom_call.1} parent=1 // pred_fallthru
      _
    // Predicated region
    $region34: #{tpu_custom_call.1} parent=1 // pred_check
      _
    $region35: #{tpu_custom_call.1} parent=1 // pred_check_branch
      %78 = sbr.rel (0) target = $region37
    $region36: #{tpu_custom_call.1} parent=1 // pred_region
      %80 = dma.done [#allocation6], 512
    $region37: #{tpu_custom_call.1} parent=1 // pred_fallthru
      _
    // Predicated region
    $region38: #{tpu_custom_call.1} parent=1 // pred_check
      _
    $region39: #{tpu_custom_call.1} parent=1 // pred_check_branch
      %82 = sbr.rel (0) target = $region41
    $region40: #{tpu_custom_call.1} parent=1 // pred_region
      %84 = dma.done [#allocation9], 512
    $region41: #{tpu_custom_call.1} parent=1 // pred_fallthru
      _
    %v85 = vld [vmem:[#allocation2] sm:$0xff]
    %v86 = vld [vmem:[#allocation2 + $0x8] sm:$0xff]
    %v87 = vld [vmem:[#allocation7] sm:$0xff]
    %v88 = vld [vmem:[#allocation7 + $0x8] sm:$0xff]
    %v89 = vld [vmem:[#allocation7 + $0x10] sm:$0xff]
    %v90 = vld [vmem:[#allocation7 + $0x18] sm:$0xff]
    %vm91 = vcmask 261120
    %v93 = vsel %vm91, %v85, 0
    %v96 = vsel %vm91, %v86, 0
    %98 = vmatpush.msra.mxu0 0.0
    %99 = vmatpush.msra.mxu0 0.0
    %100 = vmatpush.msra.mxu0 0.0
    %101 = vmatpush.msra.mxu0 0.0
    %102 = vmatpush.msra.mxu0 0.0
    %103 = vmatpush.msra.mxu0 0.0
    %104 = vmatpush.msra.mxu0 0.0
    %105 = vmatpush.msra.mxu0 0.0
    %106 = vmatpush.msra.mxu0 0.0
    %107 = vmatpush.msra.mxu0 0.0
    %108 = vmatpush.msra.mxu0 0.0
    %109 = vmatpush.msra.mxu0 0.0
    %110 = vmatpush.msra.mxu0 %v90
    %111 = vmatpush.msra.mxu0 %v89
    %112 = vmatpush.msra.mxu0 %v88
    %113 = vmatpush.msra.mxu0 %v87
    %114 = vmatmul.f32.gmra.mxu0 %v93
    %v115 = vpop.f32.mrf.mxu0
    %v116 = vadd.f32 0.0, %v115
    %117 = vmatmul.f32.gmra.mxu0 %v96
    %v118 = vpop.f32.mrf.mxu0
    %v119 = vadd.f32 0.0, %v118
    %120 = vdwg.mxu0
    %v121 = vld [vmem:[#allocation5] sm:$0x3]
    %v122 = vld [vmem:[#allocation8] sm:$0xff]
    %v123 = vld [vmem:[#allocation8 + $0x8] sm:$0xff]
    %v124 = vld [vmem:[#allocation8 + $0x10] sm:$0xff]
    %v125 = vld [vmem:[#allocation8 + $0x18] sm:$0xff]
    %v127 = vsel %vm91, %v121, 0
    %129 = vmatpush.msra.mxu0 0.0
    %130 = vmatpush.msra.mxu0 0.0
    %131 = vmatpush.msra.mxu0 0.0
    %132 = vmatpush.msra.mxu0 0.0
    %133 = vmatpush.msra.mxu0 0.0
    %134 = vmatpush.msra.mxu0 0.0
    %135 = vmatpush.msra.mxu0 0.0
    %136 = vmatpush.msra.mxu0 0.0
    %137 = vmatpush.msra.mxu0 0.0
    %138 = vmatpush.msra.mxu0 0.0
    %139 = vmatpush.msra.mxu0 0.0
    %140 = vmatpush.msra.mxu0 0.0
    %141 = vmatpush.msra.mxu0 %v125
    %142 = vmatpush.msra.mxu0 %v124
    %143 = vmatpush.msra.mxu0 %v123
    %144 = vmatpush.msra.mxu0 %v122
    %145 = vmatmul.f32.gmra.mxu0 %v127
    %v146 = vpop.f32.mrf.mxu0
    %v147 = vadd.f32 0.0, %v146
    %148 = vdwg.mxu0
    %v150 = vrot.slane %v147, 1
    %v151 = vperm.slane %v147, 0
    %v152 = vperm.slane %v150, 0
    %v155 = vadd.f32 %v116, %v151
    %v156 = vadd.f32 %v119, %v152
    %v157 = vld [vmem:[%s4] sm:$0x1]
    %v159 = vperm.slane %v157, 0
    %v161 = vadd.f32 %v155, %v159
    %v162 = vadd.f32 %v156, %v159
    %v163 = vtanh.pop %v161
    %v164 = vtanh.pop %v162
    %v165 = vld [vmem:[%s5] sm:$0x1]
    %v167 = vperm.slane %v165, 0
    %v169 = vmul.f32 %v163, %v167
    %v170 = vmul.f32 %v164, %v167
    %v171 = vsel %vm91, %v169, 0.0
    %172 = vadd.xlane.f32.xlu0 %v171
    %v173 = vpop.xlane.xlu0 %172
    %v174 = vsel %vm91, %v170, 0.0
    %175 = vadd.xlane.f32.xlu0 %v174
    %v176 = vpop.xlane.xlu0 %175
    %v179 = vlaneseq
    %v180 = vand.u32 %v179, 127
    %v181 = vperm.slane %v173, %v180
    %v182 = vperm.slane %v176, %v180
    %vm183 = vcmask 1041409
    %v184 = vsel %vm183, %v182, %v181
    %vm186 = vcmask 58368
    %v187 = vsel %vm186, %v184, -inf
    %188 = vmax.xlane.f32.xlu0 %v187
    %v189 = vpop.xlane.xlu0 %188
    %v191 = vperm.slane %v189, 0
    %v192 = vperm.slane %v189, 1
    %v195 = vsub.f32 %v173, %v191
    %v196 = vsub.f32 %v176, %v192
    %v197 = vmul.f32 %v195, 1.442695
    %v198 = vpow.pop %v197
    %v199 = vmul.f32 %v196, 1.442695
    %v200 = vpow.pop %v199
    %203 = vset.pattern.permute.xlu0 0
    %204 = vperm.xlu0 %203, %v198
    %v205 = vpop.permute.xlu0 %204
    %206 = vset.pattern.permute.xlu0 0
    %207 = vperm.xlu0 %206, %v200
    %v208 = vpop.permute.xlu0 %207
    %v209 = vperm.slane %v205, %v180
    %v210 = vperm.slane %v208, %v180
    %v211 = vsel %vm183, %v210, %v209
    %v213 = vsel %vm186, %v211, 0.0
    %214 = vadd.xlane.f32.xlu0 %v213
    %v215 = vpop.xlane.xlu0 %214
    %v216 = vrcp.pop %v215
    %v218 = vperm.slane %v216, 0
    %v219 = vperm.slane %v216, 1
    %v222 = vmul.f32 %v198, %v218
    %v223 = vmul.f32 %v200, %v219
    %226 = vset.pattern.permute.xlu0 0
    %227 = vperm.xlu0 %226, %v222
    %v228 = vpop.permute.xlu0 %227
    %229 = vset.pattern.permute.xlu0 0
    %230 = vperm.xlu0 %229, %v223
    %v231 = vpop.permute.xlu0 %230
    %v232 = vperm.slane %v228, %v180
    %v233 = vperm.slane %v231, %v180
    %v234 = vsel %vm183, %v233, %v232
    %236 = vst.msk [vmem:[#allocation10] sm:$0x3] %vm186, %v234
    // Predicated region
    $region42: #{tpu_custom_call.1} parent=1 // pred_check
      _
    $region43: #{tpu_custom_call.1} parent=1 // pred_check_branch
      %238 = sbr.rel (0) target = $region45
    $region44: #{tpu_custom_call.1} parent=1 // pred_region
      %240 = vsyncadd [#allocation4], 0
      %s242 = sshll.u32 [#allocation10], 4
      %s243 = int_to_ptr.vmem [resolvable:$true] %s242
      %s244 = sshll.u32 %s6, 4
      %s245 = int_to_ptr.hbm [resolvable:$true] %s244
      %247 = dma.vmem_to_hbm [thread:$0]  %s243, 32, %s245, [#allocation4]
    $region45: #{tpu_custom_call.1} parent=1 // pred_fallthru
      _
    // Predicated region
    $region46: #{tpu_custom_call.1} parent=1 // pred_check
      _
    $region47: #{tpu_custom_call.1} parent=1 // pred_check_branch
      %249 = sbr.rel (0) target = $region49
    $region48: #{tpu_custom_call.1} parent=1 // pred_region
      %251 = dma.done [#allocation4], 32
    $region49: #{tpu_custom_call.1} parent=1 // pred_fallthru
      _
    %252 = vsyncpa [#allocation3], 1
    %253 = vsyncpa [#allocation6], 1
    %254 = vsyncpa [#allocation9], 1
    %255 = vsyncpa [#allocation4], 1

</llo_original>
